<compile_context>
chip_gen: v6e
topology: v6e:2x2x1
jax: 0.10.0
libtpu: 0.0.40
codegen_flags: <defaults>
</compile_context>

<pallas_src>
import functools

import jax
import jax.numpy as jnp
from jax.experimental import pallas as pl
from jax.experimental.pallas import tpu as pltpu


def _pick_hw_tile(hw, c, itemsize, vmem_budget_bytes=8 * 1024 * 1024):
    """Largest multiple-of-128 divisor of `hw` such that the double-buffered
    in+out working set of pass 2 (4 buffers of (1, C, tile)) fits the budget.
    Falls back to the full spatial extent (still correct) if none exists."""
    max_tile = max(128, vmem_budget_bytes // (4 * c * itemsize))
    best = None
    t = 128
    while t <= min(hw, max_tile):
        if hw % t == 0:
            best = t
        t += 128
    return best if best is not None else hw


def _squeeze_excite_kernel(inv_hw, x_ref, w1_ref, b1_ref, alpha_ref, w2_ref,
                           b2_ref, s_ref, acc_ref):
    """Pass 1: tiled spatial-sum accumulation + (once per b) the excite MLP."""
    h = pl.program_id(1)

    @pl.when(h == 0)
    def _init():
        acc_ref[...] = jnp.zeros_like(acc_ref)

    # Partial spatial sum for this HW tile, accumulated in f32.
    x = x_ref[...]                                             # (1, C, hw_tile)
    acc_ref[...] += jnp.sum(x.astype(jnp.float32), axis=-1)    # (1, C)

    @pl.when(h == pl.num_programs(1) - 1)
    def _finalize():
        # Runs once per batch row — the tiny MLP never sits in the per-tile
        # streaming loop.
        y = acc_ref[...] * inv_hw                              # (1, C) mean
        hid = jnp.dot(y, w1_ref[...],
                      preferred_element_type=jnp.float32) + b1_ref[...]
        a = alpha_ref[0]                                       # PReLU slope (SMEM)
        hid = jnp.where(hid >= 0.0, hid, a * hid)
        sc = jnp.dot(hid, w2_ref[...],
                     preferred_element_type=jnp.float32) + b2_ref[...]
        sc = jax.nn.sigmoid(sc)                                # (1, C)
        s_ref[...] = sc[:, :, None]                            # (1, C, 1)


def _scale_kernel(x_ref, s_ref, o_ref):
    """Pass 2: o = x * s, multiply kept in the input dtype."""
    x = x_ref[...]                                             # (1, C, hw_tile)
    o_ref[...] = x * s_ref[...].astype(x.dtype)                # s: (1, C, 1)


def se_block(x, w1, b1, alpha, w2, b2, *, hw_tile=None):
    """SEBlock forward. x: (B, C, H, W) NCHW -> (B, C, H, W)."""
    B, C, H, W = x.shape
    HW = H * W
    Cr = w1.shape[1]
    itemsize = jnp.dtype(x.dtype).itemsize

    if hw_tile is None:
        hw_tile = _pick_hw_tile(HW, C, itemsize)
    assert HW % hw_tile == 0, "hw_tile must divide H*W"
    n_hw = HW // hw_tile

    x3 = x.reshape(B, C, HW)
    w1_f = w1.astype(jnp.float32)
    w2_f = w2.astype(jnp.float32)
    b1_2d = b1.reshape(1, Cr).astype(jnp.float32)
    b2_2d = b2.reshape(1, C).astype(jnp.float32)
    alpha_1d = jnp.asarray(alpha, jnp.float32).reshape(1)

    vmem_limit = 32 * 1024 * 1024

    # ---- Pass 1: squeeze (tiled spatial sum) + excite (once per batch row) --
    squeeze_excite = pl.pallas_call(
        functools.partial(_squeeze_excite_kernel, float(1.0 / HW)),
        out_shape=jax.ShapeDtypeStruct((B, C, 1), jnp.float32),
        grid_spec=pltpu.PrefetchScalarGridSpec(
            num_scalar_prefetch=0,
            grid=(B, n_hw),
            in_specs=[
                pl.BlockSpec((1, C, hw_tile), lambda b, h: (b, 0, h)),
                pl.BlockSpec((C, Cr), lambda b, h: (0, 0)),
                pl.BlockSpec((1, Cr), lambda b, h: (0, 0)),
                pl.BlockSpec(memory_space=pltpu.MemorySpace.SMEM),
                pl.BlockSpec((Cr, C), lambda b, h: (0, 0)),
                pl.BlockSpec((1, C), lambda b, h: (0, 0)),
            ],
            out_specs=pl.BlockSpec((1, C, 1), lambda b, h: (b, 0, 0)),
            scratch_shapes=[pltpu.VMEM((1, C), jnp.float32)],
        ),
        compiler_params=pltpu.CompilerParams(
            dimension_semantics=("parallel", "arbitrary"),
            vmem_limit_bytes=vmem_limit),
        cost_estimate=pl.CostEstimate(
            flops=int(B * C * HW + 4 * B * C * Cr),
            transcendentals=int(B * C),
            bytes_accessed=int(B * C * HW * itemsize + B * C * 4
                               + (2 * C * Cr + Cr + C) * 4),
        ),
    )
    scale = squeeze_excite(x3, w1_f, b1_2d, alpha_1d, w2_f, b2_2d)

    # ---- Pass 2: broadcast the per-channel scale over the spatial axis -----
    scale_call = pl.pallas_call(
        _scale_kernel,
        out_shape=jax.ShapeDtypeStruct((B, C, HW), x.dtype),
        grid_spec=pltpu.PrefetchScalarGridSpec(
            num_scalar_prefetch=0,
            grid=(B, n_hw),
            in_specs=[
                pl.BlockSpec((1, C, hw_tile), lambda b, h: (b, 0, h)),
                pl.BlockSpec((1, C, 1), lambda b, h: (b, 0, 0)),
            ],
            out_specs=pl.BlockSpec((1, C, hw_tile), lambda b, h: (b, 0, h)),
        ),
        compiler_params=pltpu.CompilerParams(
            dimension_semantics=("parallel", "parallel"),
            vmem_limit_bytes=vmem_limit),
        cost_estimate=pl.CostEstimate(
            flops=int(B * C * HW),
            transcendentals=0,
            bytes_accessed=int(2 * B * C * HW * itemsize + B * C * 4),
        ),
    )
    out = scale_call(x3, scale)
    return out.reshape(B, C, H, W)


def reference_se_block(x, w1, b1, alpha, w2, b2):
    """Pure-JAX reference mirroring the PyTorch SEBlock."""
    y = jnp.mean(x.astype(jnp.float32), axis=(2, 3))           # avg_pool + view
    h = y @ w1 + b1
    h = jnp.where(h >= 0, h, alpha * h)                        # PReLU (1 param)
    s = jax.nn.sigmoid(h @ w2 + b2)
    return x * s[:, :, None, None].astype(x.dtype)


if __name__ == "__main__":
    # SEBlock(channel=32, reduction=16) -> hidden = 2
    B, C, H, W = 2, 32, 32, 32
    reduction = 16
    Cr = C // reduction

    key = jax.random.PRNGKey(0)
    kx, k1, kb1, k2, kb2 = jax.random.split(key, 5)

    x = jax.random.normal(kx, (B, C, H, W), dtype=jnp.float32)

    # Deterministic parameter init (PyTorch Linear-style uniform bounds).
    lim1 = 1.0 / (C ** 0.5)
    w1 = jax.random.uniform(k1, (C, Cr), jnp.float32, -lim1, lim1)   # fc1.weight^T
    b1 = jax.random.uniform(kb1, (Cr,), jnp.float32, -lim1, lim1)
    lim2 = 1.0 / (Cr ** 0.5)
    w2 = jax.random.uniform(k2, (Cr, C), jnp.float32, -lim2, lim2)   # fc2.weight^T
    b2 = jax.random.uniform(kb2, (C,), jnp.float32, -lim2, lim2)
    alpha = jnp.float32(0.25)                                        # PReLU init

    # hw_tile=256 -> 4 spatial tiles per batch row: exercises the tiled sum
    # accumulation and the pipelined scale pass (lane dim = multiple of 128).
    out = se_block(x, w1, b1, alpha, w2, b2, hw_tile=256)
    jax.block_until_ready(out)

    ref = reference_se_block(x, w1, b1, alpha, w2, b2)
    assert out.shape == (B, C, H, W)
    assert jnp.allclose(out, ref, atol=2e-5, rtol=2e-5), "mismatch vs reference"

    print("KERNEL_OK")
</pallas_src>

<mosaic_0001>
module attributes {stable_mosaic.version = 11 : i64} {
  func.func @_squeeze_excite_kernel(%arg0: i32, %arg1: i32, %arg2: memref<1x32x256xf32, #tpu.memory_space<vmem>>, %arg3: memref<32x2xf32, #tpu.memory_space<vmem>>, %arg4: memref<1x2xf32, #tpu.memory_space<vmem>>, %arg5: memref<1xf32, #tpu.memory_space<smem>>, %arg6: memref<2x32xf32, #tpu.memory_space<vmem>>, %arg7: memref<1x32xf32, #tpu.memory_space<vmem>>, %arg8: memref<1x32x1xf32, #tpu.memory_space<vmem>>, %arg9: memref<1x32xf32, #tpu.memory_space<vmem>>) attributes {dimension_semantics = [#tpu.dimension_semantics<parallel>, #tpu.dimension_semantics<arbitrary>], iteration_bounds = array<i64: 2, 4>, scalar_prefetch = 0 : i64, scratch_operands = 1 : i64, tpu.core_type = #tpu.core_type<tc>, window_params = [{transform_indices = @transform_0, window_bounds = array<i64: 1, 32, 256>}, {pipeline_mode = #tpu.pipeline_mode<synchronous>, transform_indices = @transform_1, window_bounds = array<i64: 32, 2>}, {pipeline_mode = #tpu.pipeline_mode<synchronous>, transform_indices = @transform_2, window_bounds = array<i64: 1, 2>}, {transform_indices = @transform_3, window_bounds = array<i64: 1>}, {pipeline_mode = #tpu.pipeline_mode<synchronous>, transform_indices = @transform_4, window_bounds = array<i64: 2, 32>}, {pipeline_mode = #tpu.pipeline_mode<synchronous>, transform_indices = @transform_5, window_bounds = array<i64: 1, 32>}, {transform_indices = @transform_6, window_bounds = array<i64: 1, 32, 1>}]} {
    %c0_i32 = arith.constant 0 : i32
    %0 = arith.cmpi eq, %arg1, %c0_i32 : i32
    %1 = arith.extui %0 : i1 to i32
    %c0_i32_0 = arith.constant 0 : i32
    %2 = arith.cmpi ne, %1, %c0_i32_0 : i32
    scf.if %2 {
      %cst_8 = arith.constant 0.000000e+00 : f32
      %11 = vector.broadcast %cst_8 : f32 to vector<1x32xf32>
      %c0_9 = arith.constant 0 : index
      %c0_10 = arith.constant 0 : index
      %12 = vector.load %arg9[%c0_9, %c0_10] : memref<1x32xf32, #tpu.memory_space<vmem>>, vector<1x32xf32>
      tpu.vector_store %arg9[%c0_9, %c0_10], %11 {strides = array<i32>} : memref<1x32xf32, #tpu.memory_space<vmem>>, vector<1x32xf32>,
    } else {
    }
    %c0 = arith.constant 0 : index
    %c0_1 = arith.constant 0 : index
    %c0_2 = arith.constant 0 : index
    %3 = vector.load %arg2[%c0, %c0_1, %c0_2] : memref<1x32x256xf32, #tpu.memory_space<vmem>>, vector<1x32x256xf32>
    %c0_3 = arith.constant 0 : index
    %c0_4 = arith.constant 0 : index
    %4 = vector.load %arg9[%c0_3, %c0_4] : memref<1x32xf32, #tpu.memory_space<vmem>>, vector<1x32xf32>
    %cst = arith.constant dense<0.000000e+00> : vector<1x32xf32>
    %5 = vector.multi_reduction <add>, %3, %cst [2] : vector<1x32x256xf32> to vector<1x32xf32>
    %6 = arith.addf %4, %5 : vector<1x32xf32>
    %c0_5 = arith.constant 0 : index
    %c0_6 = arith.constant 0 : index
    %7 = vector.load %arg9[%c0_5, %c0_6] : memref<1x32xf32, #tpu.memory_space<vmem>>, vector<1x32xf32>
    tpu.vector_store %arg9[%c0_5, %c0_6], %6 {strides = array<i32>} : memref<1x32xf32, #tpu.memory_space<vmem>>, vector<1x32xf32>,
    %c3_i32 = arith.constant 3 : i32
    %8 = arith.cmpi eq, %arg1, %c3_i32 : i32
    %9 = arith.extui %8 : i1 to i32
    %c0_i32_7 = arith.constant 0 : i32
    %10 = arith.cmpi ne, %9, %c0_i32_7 : i32
    scf.if %10 {
      %c0_8 = arith.constant 0 : index
      %c0_9 = arith.constant 0 : index
      %11 = vector.load %arg9[%c0_8, %c0_9] : memref<1x32xf32, #tpu.memory_space<vmem>>, vector<1x32xf32>
      %cst_10 = arith.constant 9.765625E-4 : f32
      %12 = vector.broadcast %cst_10 : f32 to vector<1x32xf32>
      %13 = arith.mulf %11, %12 : vector<1x32xf32>
      %c0_11 = arith.constant 0 : index
      %c0_12 = arith.constant 0 : index
      %14 = vector.load %arg3[%c0_11, %c0_12] : memref<32x2xf32, #tpu.memory_space<vmem>>, vector<32x2xf32>
      %cst_13 = arith.constant dense<0.000000e+00> : vector<1x2xf32>
      %15 = tpu.matmul %13, %14, %cst_13 {dimension_numbers = #tpu.dot_dimension_numbers<[1], [0], [0], [1], [0, 0, 1, 1], [], []>} : vector<1x32xf32>, vector<32x2xf32>, vector<1x2xf32> -> vector<1x2xf32>
      %c0_14 = arith.constant 0 : index
      %c0_15 = arith.constant 0 : index
      %16 = vector.load %arg4[%c0_14, %c0_15] : memref<1x2xf32, #tpu.memory_space<vmem>>, vector<1x2xf32>
      %17 = arith.addf %15, %16 : vector<1x2xf32>
      %c0_16 = arith.constant 0 : index
      %18 = memref.load %arg5[%c0_16] : memref<1xf32, #tpu.memory_space<smem>>
      %cst_17 = arith.constant 0.000000e+00 : f32
      %19 = vector.broadcast %cst_17 : f32 to vector<1x2xf32>
      %20 = arith.cmpf oge, %17, %19 : vector<1x2xf32>
      %21 = vector.broadcast %18 : f32 to vector<1x2xf32>
      %22 = arith.mulf %21, %17 : vector<1x2xf32>
      %23 = arith.select %20, %17, %22 : vector<1x2xi1>, vector<1x2xf32>
      %c0_18 = arith.constant 0 : index
      %c0_19 = arith.constant 0 : index
      %24 = vector.load %arg6[%c0_18, %c0_19] : memref<2x32xf32, #tpu.memory_space<vmem>>, vector<2x32xf32>
      %cst_20 = arith.constant dense<0.000000e+00> : vector<1x32xf32>
      %25 = tpu.matmul %23, %24, %cst_20 {dimension_numbers = #tpu.dot_dimension_numbers<[1], [0], [0], [1], [0, 0, 1, 1], [], []>} : vector<1x2xf32>, vector<2x32xf32>, vector<1x32xf32> -> vector<1x32xf32>
      %c0_21 = arith.constant 0 : index
      %c0_22 = arith.constant 0 : index
      %26 = vector.load %arg7[%c0_21, %c0_22] : memref<1x32xf32, #tpu.memory_space<vmem>>, vector<1x32xf32>
      %27 = arith.addf %25, %26 : vector<1x32xf32>
      %28 = arith.negf %27 : vector<1x32xf32>
      %29 = math.exp %28 : vector<1x32xf32>
      %cst_23 = arith.constant 1.000000e+00 : f32
      %30 = vector.broadcast %cst_23 : f32 to vector<1x32xf32>
      %31 = arith.addf %30, %29 : vector<1x32xf32>
      %32 = arith.divf %30, %31 : vector<1x32xf32>
      %33 = vector.shape_cast %32 : vector<1x32xf32> to vector<1x32x1xf32>
      %c0_24 = arith.constant 0 : index
      %c0_25 = arith.constant 0 : index
      %c0_26 = arith.constant 0 : index
      %34 = vector.load %arg8[%c0_24, %c0_25, %c0_26] : memref<1x32x1xf32, #tpu.memory_space<vmem>>, vector<1x32x1xf32>
      tpu.vector_store %arg8[%c0_24, %c0_25, %c0_26], %33 {strides = array<i32>} : memref<1x32x1xf32, #tpu.memory_space<vmem>>, vector<1x32x1xf32>,
    } else {
    }
    return
  }
  func.func @transform_0(%arg0: i32, %arg1: i32) -> (i32, i32, i32) {
    %c0_i32 = arith.constant 0 : i32
    %c0_i32_0 = arith.constant 0 : i32
    return %arg0, %c0_i32, %arg1 : i32, i32, i32
  }
  func.func @transform_1(%arg0: i32, %arg1: i32) -> (i32, i32) {
    %c0_i32 = arith.constant 0 : i32
    %c0_i32_0 = arith.constant 0 : i32
    %c0_i32_1 = arith.constant 0 : i32
    return %c0_i32, %c0_i32_0 : i32, i32
  }
  func.func @transform_2(%arg0: i32, %arg1: i32) -> (i32, i32) {
    %c0_i32 = arith.constant 0 : i32
    %c0_i32_0 = arith.constant 0 : i32
    %c0_i32_1 = arith.constant 0 : i32
    return %c0_i32, %c0_i32_0 : i32, i32
  }
  func.func @transform_3(%arg0: i32, %arg1: i32) -> i32 {
    %c0_i32 = arith.constant 0 : i32
    %c0_i32_0 = arith.constant 0 : i32
    return %c0_i32 : i32
  }
  func.func @transform_4(%arg0: i32, %arg1: i32) -> (i32, i32) {
    %c0_i32 = arith.constant 0 : i32
    %c0_i32_0 = arith.constant 0 : i32
    %c0_i32_1 = arith.constant 0 : i32
    return %c0_i32, %c0_i32_0 : i32, i32
  }
  func.func @transform_5(%arg0: i32, %arg1: i32) -> (i32, i32) {
    %c0_i32 = arith.constant 0 : i32
    %c0_i32_0 = arith.constant 0 : i32
    %c0_i32_1 = arith.constant 0 : i32
    return %c0_i32, %c0_i32_0 : i32, i32
  }
  func.func @transform_6(%arg0: i32, %arg1: i32) -> (i32, i32, i32) {
    %c0_i32 = arith.constant 0 : i32
    %c0_i32_0 = arith.constant 0 : i32
    %c0_i32_1 = arith.constant 0 : i32
    return %arg0, %c0_i32, %c0_i32_0 : i32, i32, i32
  }
}

</mosaic_0001>

<llo_original>
// kernel: tpu_custom_call.1
$region0: #{tpu_custom_call.1}
  #allocation0 [shape = 'u32[]', space=smem, size = 0x4, offset = 0x4, fixed_abs, tag = 'smem constant byte address 0x4 - core index']
  #allocation1 [shape = 'u32[144,128]{1,0:T(1,128)}', space=vmem, size = 0x12000, scoped, tag = 'internal scratch']
  #allocation2 [shape = 'f32[1,32]{1,0:T(1,128)}', space=vmem, size = 0x200, scoped, tag = 'scratch operand']
  #allocation3 [shape = 'f32[1]{0:T(128)S(6)}', space=smem, size = 0x200, scoped, tag = 'scoped memory for tpu_custom_call.1']
  %s0 = inlined_call_operand.hbm [shape: f32[2,32,1024], index: 0, kind: input, shape index: {}]
  %s1 = inlined_call_operand.vmem [shape: f32[32,2], index: 1, kind: input, shape index: {}]
  %s2 = inlined_call_operand.vmem [shape: f32[1,2], index: 2, kind: input, shape index: {}]
  %s3 = inlined_call_operand.<no memory space> [shape: f32[1], index: 3, kind: input, shape index: {}]
  %s4 = inlined_call_operand.vmem [shape: f32[2,32], index: 4, kind: input, shape index: {}]
  %s5 = inlined_call_operand.vmem [shape: f32[1,32], index: 5, kind: input, shape index: {}]
  %s6 = inlined_call_operand.vmem [shape: f32[2,32,1], index: 6, kind: output, shape index: {}]
  %s7 = sld [smem:[#allocation0]]
  $region69: #{tpu_custom_call.1} parent=0
    _
  %s9 = ssub.s32 1, %s7
  %s10 = scalar_select 0, %s9, %s7
  %11 = sst [smem:[#allocation3]] %s3
  $region1: #{tpu_custom_call.1} parent=0
    #allocation4 [shape = 'u8[65536]{0}', space=vmem, size = 0x10000, scoped, tag = 'input window, operand 0']
    #allocation5 [shape = 's32[2]{0}', space=sflag, size = 0x8, scoped, tag = 'scoped memory for tpu_custom_call.1']
    %12 = vsyncpa [#allocation5], 0
    %s13 = scalar_lea.sflag [#allocation5], 1
    %14 = vsyncpa %s13, 0
    loop: start=0, step=1, limit=10
    $region2: #{tpu_custom_call.1} parent=1 // loop_pre_header
      _
    $region3: #{tpu_custom_call.1} parent=1 // loop_header
      %s16 = sphi 0, %s20
      %p17 = scmp.ge.s32.totalorder %s16, 10
      %s23 = sphi 0, %s35
      %s24 = sphi 0, %s31
      %s25 = sphi 0, %s23
      %s26 = sphi 0, %s24
      %s27 = sphi 0, %s25
      %s28 = sphi 0, %s26
      %s40 = sphi 0, %s42
      %s43 = sphi 0, %s40
      %s44 = sphi 0, %s43
      %s60 = sphi 0, %s44
      %s64 = sphi 0, %s64
      %s66 = sphi 0, %s64
      %s67 = sphi 0, %s66
      %s81 = sphi 0, %s67
      %s85 = sphi 0, %s85
      %s87 = sphi 0, %s85
      %s88 = sphi 0, %s87
      %s102 = sphi 0, %s88
      %s106 = sphi 0, %s106
      %s108 = sphi 0, %s106
      %s109 = sphi 0, %s108
      %s123 = sphi 0, %s109
      %s127 = sphi 0, %s127
      %s129 = sphi 0, %s127
      %s130 = sphi 0, %s129
      %s144 = sphi 0, %s130
      %s148 = sphi 0, %s148
      %s150 = sphi 0, %s148
      %s151 = sphi 0, %s150
      %s165 = sphi 0, %s151
      %s171 = sphi 0, %s173
      %s174 = sphi 0, %s171
      %s175 = sphi 0, %s174
      %s191 = sphi 0, %s175
    $region4: #{tpu_custom_call.1} parent=1 // loop_header_branch
      %19 = sbr.rel (%p17) target = $region8
    $region5: #{tpu_custom_call.1} parent=1 // loop_body
      %s21 = ssub.s32 %s16, 1
      %s22 = ssub.s32 %s16, 2
      %s29 = sadd.s32 1, %s24
      %p30 = scmp.ge.s32.totalorder %s29, 4
      %s31 = scalar_select %p30, 0, %s29
      %s32 = sadd.s32 1, %s23
      %s33 = scalar_select %p30, %s32, %s23
      %p34 = scmp.ge.s32.totalorder %s33, 2
      %s35 = scalar_select %p34, 0, %s33
      %s36 = ssub.s32 %s23, %s35
      %s37 = ssub.s32 %s24, %s31
      %s38 = sor.u32 %s36, %s37
      %p39 = scmp.eq.s32.totalorder %s38, 0
      %s41 = sadd.s32 %s40, 1
      %s42 = scalar_select %p39, %s40, %s41
      %p45 = pneg %p39
      %p46 = scmp.eq.s32.totalorder %s16, 7
      %p47 = por %p45, %p46
      %p48 = scmp.ne.s32.totalorder %s40, %s43
      %p49 = scmp.eq.s32.totalorder %s16, 0
      %p50 = por %p48, %p49
      %p51 = scmp.ne.s32.totalorder %s40, %s43
      %p52 = scmp.eq.s32.totalorder %s21, 7
      %p53 = por %p51, %p52
      %p54 = scmp.ne.s32.totalorder %s43, %s44
      %p55 = scmp.eq.s32.totalorder %s21, 0
      %p56 = por %p54, %p55
      %p57 = scmp.ne.s32.totalorder %s43, %s44
      %p58 = scmp.eq.s32.totalorder %s22, 7
      %p59 = por %p57, %p58
      %p61 = scmp.ne.s32.totalorder %s44, %s60
      %p62 = scmp.eq.s32.totalorder %s22, 0
      %p63 = por %p61, %p62
      %s65 = sadd.s32 %s64, 1
      %p68 = scmp.eq.s32.totalorder %s16, 7
      %p69 = scmp.ne.s32.totalorder %s64, %s66
      %p70 = scmp.eq.s32.totalorder %s16, 0
      %p71 = por %p69, %p70
      %p72 = scmp.ne.s32.totalorder %s64, %s66
      %p73 = scmp.eq.s32.totalorder %s21, 7
      %p74 = por %p72, %p73
      %p75 = scmp.ne.s32.totalorder %s66, %s67
      %p76 = scmp.eq.s32.totalorder %s21, 0
      %p77 = por %p75, %p76
      %p78 = scmp.ne.s32.totalorder %s66, %s67
      %p79 = scmp.eq.s32.totalorder %s22, 7
      %p80 = por %p78, %p79
      %p82 = scmp.ne.s32.totalorder %s67, %s81
      %p83 = scmp.eq.s32.totalorder %s22, 0
      %p84 = por %p82, %p83
      %s86 = sadd.s32 %s85, 1
      %p89 = scmp.eq.s32.totalorder %s16, 7
      %p90 = scmp.ne.s32.totalorder %s85, %s87
      %p91 = scmp.eq.s32.totalorder %s16, 0
      %p92 = por %p90, %p91
      %p93 = scmp.ne.s32.totalorder %s85, %s87
      %p94 = scmp.eq.s32.totalorder %s21, 7
      %p95 = por %p93, %p94
      %p96 = scmp.ne.s32.totalorder %s87, %s88
      %p97 = scmp.eq.s32.totalorder %s21, 0
      %p98 = por %p96, %p97
      %p99 = scmp.ne.s32.totalorder %s87, %s88
      %p100 = scmp.eq.s32.totalorder %s22, 7
      %p101 = por %p99, %p100
      %p103 = scmp.ne.s32.totalorder %s88, %s102
      %p104 = scmp.eq.s32.totalorder %s22, 0
      %p105 = por %p103, %p104
      %s107 = sadd.s32 %s106, 1
      %p110 = scmp.eq.s32.totalorder %s16, 7
      %p111 = scmp.ne.s32.totalorder %s106, %s108
      %p112 = scmp.eq.s32.totalorder %s16, 0
      %p113 = por %p111, %p112
      %p114 = scmp.ne.s32.totalorder %s106, %s108
      %p115 = scmp.eq.s32.totalorder %s21, 7
      %p116 = por %p114, %p115
      %p117 = scmp.ne.s32.totalorder %s108, %s109
      %p118 = scmp.eq.s32.totalorder %s21, 0
      %p119 = por %p117, %p118
      %p120 = scmp.ne.s32.totalorder %s108, %s109
      %p121 = scmp.eq.s32.totalorder %s22, 7
      %p122 = por %p120, %p121
      %p124 = scmp.ne.s32.totalorder %s109, %s123
      %p125 = scmp.eq.s32.totalorder %s22, 0
      %p126 = por %p124, %p125
      %s128 = sadd.s32 %s127, 1
      %p131 = scmp.eq.s32.totalorder %s16, 7
      %p132 = scmp.ne.s32.totalorder %s127, %s129
      %p133 = scmp.eq.s32.totalorder %s16, 0
      %p134 = por %p132, %p133
      %p135 = scmp.ne.s32.totalorder %s127, %s129
      %p136 = scmp.eq.s32.totalorder %s21, 7
      %p137 = por %p135, %p136
      %p138 = scmp.ne.s32.totalorder %s129, %s130
      %p139 = scmp.eq.s32.totalorder %s21, 0
      %p140 = por %p138, %p139
      %p141 = scmp.ne.s32.totalorder %s129, %s130
      %p142 = scmp.eq.s32.totalorder %s22, 7
      %p143 = por %p141, %p142
      %p145 = scmp.ne.s32.totalorder %s130, %s144
      %p146 = scmp.eq.s32.totalorder %s22, 0
      %p147 = por %p145, %p146
      %s149 = sadd.s32 %s148, 1
      %p152 = scmp.eq.s32.totalorder %s16, 7
      %p153 = scmp.ne.s32.totalorder %s148, %s150
      %p154 = scmp.eq.s32.totalorder %s16, 0
      %p155 = por %p153, %p154
      %p156 = scmp.ne.s32.totalorder %s148, %s150
      %p157 = scmp.eq.s32.totalorder %s21, 7
      %p158 = por %p156, %p157
      %p159 = scmp.ne.s32.totalorder %s150, %s151
      %p160 = scmp.eq.s32.totalorder %s21, 0
      %p161 = por %p159, %p160
      %p162 = scmp.ne.s32.totalorder %s150, %s151
      %p163 = scmp.eq.s32.totalorder %s22, 7
      %p164 = por %p162, %p163
      %p166 = scmp.ne.s32.totalorder %s151, %s165
      %p167 = scmp.eq.s32.totalorder %s22, 0
      %p168 = por %p166, %p167
      %s169 = ssub.s32 %s23, %s35
      %p170 = scmp.eq.s32.totalorder %s169, 0
      %s172 = sadd.s32 %s171, 1
      %s173 = scalar_select %p170, %s171, %s172
      %p176 = pneg %p170
      %p177 = scmp.eq.s32.totalorder %s16, 7
      %p178 = por %p176, %p177
      %p179 = scmp.ne.s32.totalorder %s171, %s174
      %p180 = scmp.eq.s32.totalorder %s16, 0
      %p181 = por %p179, %p180
      %p182 = scmp.ne.s32.totalorder %s171, %s174
      %p183 = scmp.eq.s32.totalorder %s21, 7
      %p184 = por %p182, %p183
      %p185 = scmp.ne.s32.totalorder %s174, %s175
      %p186 = scmp.eq.s32.totalorder %s21, 0
      %p187 = por %p185, %p186
      %p188 = scmp.ne.s32.totalorder %s174, %s175
      %p189 = scmp.eq.s32.totalorder %s22, 7
      %p190 = por %p188, %p189
      %p192 = scmp.ne.s32.totalorder %s175, %s191
      %p193 = scmp.eq.s32.totalorder %s22, 0
      %p194 = por %p192, %p193
      %p195 = scmp.le.s32.totalorder 1, %s16
      %p196 = scmp.lt.s32.totalorder %s16, 9
      %p197 = pnand %p195, %p196
      %p198 = pneg %p197
      // Predicated region
      $region9: #{tpu_custom_call.1} parent=5 // pred_check
        _
      $region10: #{tpu_custom_call.1} parent=5 // pred_check_branch
        %200 = sbr.rel (%p197) target = $region12
      $region11: #{tpu_custom_call.1} parent=5 // pred_region
        %s201 = ssub.s32 %s16, 1
        // Predicated region
        $region13: #{tpu_custom_call.1} parent=11 // pred_check
          %p202 = pneg %p77
        $region14: #{tpu_custom_call.1} parent=11 // pred_check_branch
          %204 = sbr.rel (%p202) target = $region16
        $region15: #{tpu_custom_call.1} parent=11 // pred_region
          _
        $region16: #{tpu_custom_call.1} parent=11 // pred_fallthru
          _
        // Predicated region
        $region17: #{tpu_custom_call.1} parent=11 // pred_check
          %p205 = pneg %p98
        $region18: #{tpu_custom_call.1} parent=11 // pred_check_branch
          %207 = sbr.rel (%p205) target = $region20
        $region19: #{tpu_custom_call.1} parent=11 // pred_region
          _
        $region20: #{tpu_custom_call.1} parent=11 // pred_fallthru
          _
        // Predicated region
        $region21: #{tpu_custom_call.1} parent=11 // pred_check
          %p208 = pneg %p119
        $region22: #{tpu_custom_call.1} parent=11 // pred_check_branch
          %210 = sbr.rel (%p208) target = $region24
        $region23: #{tpu_custom_call.1} parent=11 // pred_region
          _
        $region24: #{tpu_custom_call.1} parent=11 // pred_fallthru
          _
        // Predicated region
        $region25: #{tpu_custom_call.1} parent=11 // pred_check
          %p211 = pneg %p140
        $region26: #{tpu_custom_call.1} parent=11 // pred_check_branch
          %213 = sbr.rel (%p211) target = $region28
        $region27: #{tpu_custom_call.1} parent=11 // pred_region
          _
        $region28: #{tpu_custom_call.1} parent=11 // pred_fallthru
          _
        // Predicated region
        $region29: #{tpu_custom_call.1} parent=11 // pred_check
          %p214 = pneg %p161
        $region30: #{tpu_custom_call.1} parent=11 // pred_check_branch
          %216 = sbr.rel (%p214) target = $region32
        $region31: #{tpu_custom_call.1} parent=11 // pred_region
          _
        $region32: #{tpu_custom_call.1} parent=11 // pred_fallthru
          _
      $region12: #{tpu_custom_call.1} parent=5 // pred_fallthru
        _
      %p217 = scmp.lt.s32.totalorder %s16, 8
      // Predicated region
      $region33: #{tpu_custom_call.1} parent=5 // pred_check
        %p218 = pneg %p217
      $region34: #{tpu_custom_call.1} parent=5 // pred_check_branch
        %220 = sbr.rel (%p218) target = $region36
      $region35: #{tpu_custom_call.1} parent=5 // pred_region
        // Predicated region
        $region37: #{tpu_custom_call.1} parent=35 // pred_check
          %p221 = pneg %p50
        $region38: #{tpu_custom_call.1} parent=35 // pred_check_branch
          %223 = sbr.rel (%p221) target = $region40
        $region39: #{tpu_custom_call.1} parent=35 // pred_region
          %s224 = sand.u32 %s40, 1
          %s225 = scalar_lea.sflag [#allocation5], %s224
          %s226 = sand.u32 %s40, 1
          %s227 = smul.addr %s226, 64
          %s228 = scalar_lea.vmem [#allocation4], %s227
          %s229 = smul.u32 2, %s24
          %s231 = ssub.s32 1024, 1024
          %232 = vsyncadd %s225, %s231
          %s233 = smul.addr %s23, 32
          %s234 = sadd.s32 %s229, %s233
          %s235 = smul.addr %s234, 128
          %s236 = scalar_lea.hbm %s0, %s235
          %s237 = sshll.u32 %s228, 4
          %s238 = int_to_ptr.vmem [resolvable:$true] %s237
          %243 = dma.hbm_to_vmem [thread:$0]  %s236, 1024, %s238, %s225, 1024, 256, 16
        $region40: #{tpu_custom_call.1} parent=35 // pred_fallthru
          _
      $region36: #{tpu_custom_call.1} parent=5 // pred_fallthru
        _
      %p244 = scmp.le.s32.totalorder 1, %s16
      %p245 = scmp.lt.s32.totalorder %s16, 9
      %p246 = pnand %p244, %p245
      %p247 = pneg %p246
      // Predicated region
      $region41: #{tpu_custom_call.1} parent=5 // pred_check
        _
      $region42: #{tpu_custom_call.1} parent=5 // pred_check_branch
        %249 = sbr.rel (%p246) target = $region44
      $region43: #{tpu_custom_call.1} parent=5 // pred_region
        %s250 = ssub.s32 %s16, 1
        %s251 = sand.u32 %s43, 1
        %s252 = scalar_lea.sflag [#allocation5], %s251
        %s253 = sand.u32 %s43, 1
        %s254 = smul.addr %s253, 64
        %s255 = scalar_lea.vmem [#allocation4], %s254
        // Predicated region
        $region45: #{tpu_custom_call.1} parent=43 // pred_check
          %p256 = pneg %p56
        $region46: #{tpu_custom_call.1} parent=43 // pred_check_branch
          %258 = sbr.rel (%p256) target = $region48
        $region47: #{tpu_custom_call.1} parent=43 // pred_region
          %259 = dma.done %s252, 1024
        $region48: #{tpu_custom_call.1} parent=43 // pred_fallthru
          _
        %s260 = sand.u32 %s43, 1
        %s261 = scalar_lea.sflag [#allocation5], %s260
        %s262 = sand.u32 %s43, 1
        %s263 = smul.addr %s262, 64
        %s264 = scalar_lea.vmem [#allocation4], %s263
        %p265 = pneg %p56
        %p266 = pneg %p53
        %p267 = pneg %p77
        %p268 = pneg %p74
        %p269 = pneg %p98
        %p270 = pneg %p95
        %p271 = pneg %p119
        %p272 = pneg %p116
        %p273 = pneg %p140
        %p274 = pneg %p137
        %p275 = pneg %p161
        %p276 = pneg %p158
        %p277 = pneg %p187
        %p278 = pneg %p184
        %p279 = scmp.lt.s32.totalorder %s25, 1
        %s280 = scalar_select %p279, %s25, 1
        %s281 = smul.addr %s280, 4
        %s282 = smul.addr %s281, 8
        %s283 = scalar_lea.vmem %s6, %s282
        %s284 = smul.u32 2, %s26
        %p285 = scmp.lt.s32.totalorder %s25, 1
        %s286 = scalar_select %p285, %s25, 1
        %s287 = smul.addr %s286, 4
        %s288 = smul.addr %s287, 8
        %s289 = scalar_lea.vmem %s6, %s288
        %p290 = scmp.eq.s32.totalorder %s26, 0
        // Predicated region
        $region49: #{tpu_custom_call.1} parent=43 // pred_check
          %p291 = pneg %p290
        $region50: #{tpu_custom_call.1} parent=43 // pred_check_branch
          %293 = sbr.rel (%p291) target = $region52
        $region51: #{tpu_custom_call.1} parent=43 // pred_region
          %vm294 = vcmask 253952
          %295 = vst.msk [vmem:[#allocation2] sm:$0x1] %vm294, 0.0
        $region52: #{tpu_custom_call.1} parent=43 // pred_fallthru
          _
        %v296 = vld [vmem:[%s255] sm:$0xff]
        %v297 = vld [vmem:[%s255 + $0x8] sm:$0xff]
        %v298 = vld [vmem:[%s255 + $0x10] sm:$0xff]
        %v299 = vld [vmem:[%s255 + $0x18] sm:$0xff]
        %v300 = vld [vmem:[%s255 + $0x20] sm:$0xff]
        %v301 = vld [vmem:[%s255 + $0x28] sm:$0xff]
        %v302 = vld [vmem:[%s255 + $0x30] sm:$0xff]
        %v303 = vld [vmem:[%s255 + $0x38] sm:$0xff]
        %v304 = vld [vmem:[#allocation2] sm:$0x1]
        %v305 = vadd.f32 %v296, %v297
        %306 = vadd.xlane.f32.xlu0 %v305
        %v307 = vpop.xlane.xlu0 %306
        %v308 = vadd.f32 %v298, %v299
        %309 = vadd.xlane.f32.xlu0 %v308
        %v310 = vpop.xlane.xlu0 %309
        %v311 = vadd.f32 %v300, %v301
        %312 = vadd.xlane.f32.xlu0 %v311
        %v313 = vpop.xlane.xlu0 %312
        %v314 = vadd.f32 %v302, %v303
        %315 = vadd.xlane.f32.xlu0 %v314
        %v316 = vpop.xlane.xlu0 %315
        %v321 = vlaneseq
        %v322 = vshrl.u32 %v321, 7
        %v323 = vsub.s32 0, %v322
        %v324 = vrot.slane %v307, %v323
        %v325 = vlaneseq
        %v326 = vshrl.u32 %v325, 7
        %v327 = vsub.s32 1, %v326
        %v328 = vrot.slane %v307, %v327
        %v329 = vlaneseq
        %v330 = vshrl.u32 %v329, 7
        %v331 = vsub.s32 2, %v330
        %v332 = vrot.slane %v307, %v331
        %v333 = vlaneseq
        %v334 = vshrl.u32 %v333, 7
        %v335 = vsub.s32 3, %v334
        %v336 = vrot.slane %v307, %v335
        %v337 = vlaneseq
        %v338 = vshrl.u32 %v337, 7
        %v339 = vsub.s32 4, %v338
        %v340 = vrot.slane %v307, %v339
        %v341 = vlaneseq
        %v342 = vshrl.u32 %v341, 7
        %v343 = vsub.s32 5, %v342
        %v344 = vrot.slane %v307, %v343
        %v345 = vlaneseq
        %v346 = vshrl.u32 %v345, 7
        %v347 = vsub.s32 6, %v346
        %v348 = vrot.slane %v307, %v347
        %v349 = vlaneseq
        %v350 = vshrl.u32 %v349, 7
        %v351 = vsub.s32 7, %v350
        %v352 = vrot.slane %v307, %v351
        %v353 = vlaneseq
        %v354 = vshrl.u32 %v353, 7
        %v355 = vsub.s32 0, %v354
        %v356 = vrot.slane %v310, %v355
        %v357 = vlaneseq
        %v358 = vshrl.u32 %v357, 7
        %v359 = vsub.s32 1, %v358
        %v360 = vrot.slane %v310, %v359
        %v361 = vlaneseq
        %v362 = vshrl.u32 %v361, 7
        %v363 = vsub.s32 2, %v362
        %v364 = vrot.slane %v310, %v363
        %v365 = vlaneseq
        %v366 = vshrl.u32 %v365, 7
        %v367 = vsub.s32 3, %v366
        %v368 = vrot.slane %v310, %v367
        %v369 = vlaneseq
        %v370 = vshrl.u32 %v369, 7
        %v371 = vsub.s32 4, %v370
        %v372 = vrot.slane %v310, %v371
        %v373 = vlaneseq
        %v374 = vshrl.u32 %v373, 7
        %v375 = vsub.s32 5, %v374
        %v376 = vrot.slane %v310, %v375
        %v377 = vlaneseq
        %v378 = vshrl.u32 %v377, 7
        %v379 = vsub.s32 6, %v378
        %v380 = vrot.slane %v310, %v379
        %v381 = vlaneseq
        %v382 = vshrl.u32 %v381, 7
        %v383 = vsub.s32 7, %v382
        %v384 = vrot.slane %v310, %v383
        %v385 = vlaneseq
        %v386 = vshrl.u32 %v385, 7
        %v387 = vsub.s32 0, %v386
        %v388 = vrot.slane %v313, %v387
        %v389 = vlaneseq
        %v390 = vshrl.u32 %v389, 7
        %v391 = vsub.s32 1, %v390
        %v392 = vrot.slane %v313, %v391
        %v393 = vlaneseq
        %v394 = vshrl.u32 %v393, 7
        %v395 = vsub.s32 2, %v394
        %v396 = vrot.slane %v313, %v395
        %v397 = vlaneseq
        %v398 = vshrl.u32 %v397, 7
        %v399 = vsub.s32 3, %v398
        %v400 = vrot.slane %v313, %v399
        %v401 = vlaneseq
        %v402 = vshrl.u32 %v401, 7
        %v403 = vsub.s32 4, %v402
        %v404 = vrot.slane %v313, %v403
        %v405 = vlaneseq
        %v406 = vshrl.u32 %v405, 7
        %v407 = vsub.s32 5, %v406
        %v408 = vrot.slane %v313, %v407
        %v409 = vlaneseq
        %v410 = vshrl.u32 %v409, 7
        %v411 = vsub.s32 6, %v410
        %v412 = vrot.slane %v313, %v411
        %v413 = vlaneseq
        %v414 = vshrl.u32 %v413, 7
        %v415 = vsub.s32 7, %v414
        %v416 = vrot.slane %v313, %v415
        %v417 = vlaneseq
        %v418 = vshrl.u32 %v417, 7
        %v419 = vsub.s32 0, %v418
        %v420 = vrot.slane %v316, %v419
        %v421 = vlaneseq
        %v422 = vshrl.u32 %v421, 7
        %v423 = vsub.s32 1, %v422
        %v424 = vrot.slane %v316, %v423
        %v425 = vlaneseq
        %v426 = vshrl.u32 %v425, 7
        %v427 = vsub.s32 2, %v426
        %v428 = vrot.slane %v316, %v427
        %v429 = vlaneseq
        %v430 = vshrl.u32 %v429, 7
        %v431 = vsub.s32 3, %v430
        %v432 = vrot.slane %v316, %v431
        %v433 = vlaneseq
        %v434 = vshrl.u32 %v433, 7
        %v435 = vsub.s32 4, %v434
        %v436 = vrot.slane %v316, %v435
        %v437 = vlaneseq
        %v438 = vshrl.u32 %v437, 7
        %v439 = vsub.s32 5, %v438
        %v440 = vrot.slane %v316, %v439
        %v441 = vlaneseq
        %v442 = vshrl.u32 %v441, 7
        %v443 = vsub.s32 6, %v442
        %v444 = vrot.slane %v316, %v443
        %v445 = vlaneseq
        %v446 = vshrl.u32 %v445, 7
        %v447 = vsub.s32 7, %v446
        %v448 = vrot.slane %v316, %v447
        %v449 = vcombine.low %v324, %v328
        %v450 = vcombine.low %v332, %v336
        %v451 = vcombine.low %v340, %v344
        %v452 = vcombine.low %v348, %v352
        %v454 = vunpack.c.l.s4 1966171168
        %v455 = vunpack.c.0.s8 %v454
        %v456 = vlaneseq
        %v457 = vshrl.u32 %v456, 7
        %v458 = vsub.s32 %v455, %v457
        %v459 = vrot.slane %v449, %v458
        %v461 = vunpack.c.l.s4 1966171168
        %v462 = vunpack.c.0.s8 %v461
        %v463 = vlaneseq
        %v464 = vshrl.u32 %v463, 7
        %v465 = vsub.s32 %v462, %v464
        %v466 = vrot.slane %v450, %v465
        %v468 = vunpack.c.l.s4 1966171168
        %v469 = vunpack.c.0.s8 %v468
        %v470 = vlaneseq
        %v471 = vshrl.u32 %v470, 7
        %v472 = vsub.s32 %v469, %v471
        %v473 = vrot.slane %v451, %v472
        %v475 = vunpack.c.l.s4 1966171168
        %v476 = vunpack.c.0.s8 %v475
        %v477 = vlaneseq
        %v478 = vshrl.u32 %v477, 7
        %v479 = vsub.s32 %v476, %v478
        %v480 = vrot.slane %v452, %v479
        %v481 = vcombine.low %v459, %v466
        %v482 = vcombine.low %v473, %v480
        %v484 = vunpack.c.l.s4 1966171168
        %v485 = vunpack.c.0.s8 %v484
        %v486 = vlaneseq
        %v487 = vshrl.u32 %v486, 7
        %v488 = vsub.s32 %v485, %v487
        %v489 = vrot.slane %v481, %v488
        %v491 = vunpack.c.l.s4 1966171168
        %v492 = vunpack.c.0.s8 %v491
        %v493 = vlaneseq
        %v494 = vshrl.u32 %v493, 7
        %v495 = vsub.s32 %v492, %v494
        %v496 = vrot.slane %v482, %v495
        %v497 = vcombine.low %v489, %v496
        %v498 = vcombine.low %v356, %v360
        %v499 = vcombine.low %v364, %v368
        %v500 = vcombine.low %v372, %v376
        %v501 = vcombine.low %v380, %v384
        %v503 = vunpack.c.l.s4 1966171168
        %v504 = vunpack.c.0.s8 %v503
        %v505 = vlaneseq
        %v506 = vshrl.u32 %v505, 7
        %v507 = vsub.s32 %v504, %v506
        %v508 = vrot.slane %v498, %v507
        %v510 = vunpack.c.l.s4 1966171168
        %v511 = vunpack.c.0.s8 %v510
        %v512 = vlaneseq
        %v513 = vshrl.u32 %v512, 7
        %v514 = vsub.s32 %v511, %v513
        %v515 = vrot.slane %v499, %v514
        %v517 = vunpack.c.l.s4 1966171168
        %v518 = vunpack.c.0.s8 %v517
        %v519 = vlaneseq
        %v520 = vshrl.u32 %v519, 7
        %v521 = vsub.s32 %v518, %v520
        %v522 = vrot.slane %v500, %v521
        %v524 = vunpack.c.l.s4 1966171168
        %v525 = vunpack.c.0.s8 %v524
        %v526 = vlaneseq
        %v527 = vshrl.u32 %v526, 7
        %v528 = vsub.s32 %v525, %v527
        %v529 = vrot.slane %v501, %v528
        %v530 = vcombine.low %v508, %v515
        %v531 = vcombine.low %v522, %v529
        %v533 = vunpack.c.l.s4 1966171168
        %v534 = vunpack.c.0.s8 %v533
        %v535 = vlaneseq
        %v536 = vshrl.u32 %v535, 7
        %v537 = vsub.s32 %v534, %v536
        %v538 = vrot.slane %v530, %v537
        %v540 = vunpack.c.l.s4 1966171168
        %v541 = vunpack.c.0.s8 %v540
        %v542 = vlaneseq
        %v543 = vshrl.u32 %v542, 7
        %v544 = vsub.s32 %v541, %v543
        %v545 = vrot.slane %v531, %v544
        %v546 = vcombine.low %v538, %v545
        %v547 = vcombine.low %v388, %v392
        %v548 = vcombine.low %v396, %v400
        %v549 = vcombine.low %v404, %v408
        %v550 = vcombine.low %v412, %v416
        %v552 = vunpack.c.l.s4 1966171168
        %v553 = vunpack.c.0.s8 %v552
        %v554 = vlaneseq
        %v555 = vshrl.u32 %v554, 7
        %v556 = vsub.s32 %v553, %v555
        %v557 = vrot.slane %v547, %v556
        %v559 = vunpack.c.l.s4 1966171168
        %v560 = vunpack.c.0.s8 %v559
        %v561 = vlaneseq
        %v562 = vshrl.u32 %v561, 7
        %v563 = vsub.s32 %v560, %v562
        %v564 = vrot.slane %v548, %v563
        %v566 = vunpack.c.l.s4 1966171168
        %v567 = vunpack.c.0.s8 %v566
        %v568 = vlaneseq
        %v569 = vshrl.u32 %v568, 7
        %v570 = vsub.s32 %v567, %v569
        %v571 = vrot.slane %v549, %v570
        %v573 = vunpack.c.l.s4 1966171168
        %v574 = vunpack.c.0.s8 %v573
        %v575 = vlaneseq
        %v576 = vshrl.u32 %v575, 7
        %v577 = vsub.s32 %v574, %v576
        %v578 = vrot.slane %v550, %v577
        %v579 = vcombine.low %v557, %v564
        %v580 = vcombine.low %v571, %v578
        %v582 = vunpack.c.l.s4 1966171168
        %v583 = vunpack.c.0.s8 %v582
        %v584 = vlaneseq
        %v585 = vshrl.u32 %v584, 7
        %v586 = vsub.s32 %v583, %v585
        %v587 = vrot.slane %v579, %v586
        %v589 = vunpack.c.l.s4 1966171168
        %v590 = vunpack.c.0.s8 %v589
        %v591 = vlaneseq
        %v592 = vshrl.u32 %v591, 7
        %v593 = vsub.s32 %v590, %v592
        %v594 = vrot.slane %v580, %v593
        %v595 = vcombine.low %v587, %v594
        %v596 = vcombine.low %v420, %v424
        %v597 = vcombine.low %v428, %v432
        %v598 = vcombine.low %v436, %v440
        %v599 = vcombine.low %v444, %v448
        %v601 = vunpack.c.l.s4 1966171168
        %v602 = vunpack.c.0.s8 %v601
        %v603 = vlaneseq
        %v604 = vshrl.u32 %v603, 7
        %v605 = vsub.s32 %v602, %v604
        %v606 = vrot.slane %v596, %v605
        %v608 = vunpack.c.l.s4 1966171168
        %v609 = vunpack.c.0.s8 %v608
        %v610 = vlaneseq
        %v611 = vshrl.u32 %v610, 7
        %v612 = vsub.s32 %v609, %v611
        %v613 = vrot.slane %v597, %v612
        %v615 = vunpack.c.l.s4 1966171168
        %v616 = vunpack.c.0.s8 %v615
        %v617 = vlaneseq
        %v618 = vshrl.u32 %v617, 7
        %v619 = vsub.s32 %v616, %v618
        %v620 = vrot.slane %v598, %v619
        %v622 = vunpack.c.l.s4 1966171168
        %v623 = vunpack.c.0.s8 %v622
        %v624 = vlaneseq
        %v625 = vshrl.u32 %v624, 7
        %v626 = vsub.s32 %v623, %v625
        %v627 = vrot.slane %v599, %v626
        %v628 = vcombine.low %v606, %v613
        %v629 = vcombine.low %v620, %v627
        %v631 = vunpack.c.l.s4 1966171168
        %v632 = vunpack.c.0.s8 %v631
        %v633 = vlaneseq
        %v634 = vshrl.u32 %v633, 7
        %v635 = vsub.s32 %v632, %v634
        %v636 = vrot.slane %v628, %v635
        %v638 = vunpack.c.l.s4 1966171168
        %v639 = vunpack.c.0.s8 %v638
        %v640 = vlaneseq
        %v641 = vshrl.u32 %v640, 7
        %v642 = vsub.s32 %v639, %v641
        %v643 = vrot.slane %v629, %v642
        %v644 = vcombine.low %v636, %v643
        %645 = vset.pattern.permute.xlu0 0
        %646 = vperm.xlu0 %645, %v497
        %v647 = vpop.permute.xlu0 %646
        %648 = vset.pattern.permute.xlu0 0
        %649 = vperm.xlu0 %648, %v546
        %v650 = vpop.permute.xlu0 %649
        %651 = vset.pattern.permute.xlu0 0
        %652 = vperm.xlu0 %651, %v595
        %v653 = vpop.permute.xlu0 %652
        %654 = vset.pattern.permute.xlu0 0
        %655 = vperm.xlu0 %654, %v644
        %v656 = vpop.permute.xlu0 %655
        %v657 = vlaneseq
        %v658 = vand.u32 %v657, 127
        %v659 = vlaneseq
        %v660 = vshrl.u32 %v659, 7
        %v661 = vsub.s32 %v658, %v660
        %v662 = vrot.slane %v647, %v661
        %v663 = vadd.s32 %v658, 4294967288
        %v664 = vlaneseq
        %v665 = vshrl.u32 %v664, 7
        %v666 = vsub.s32 %v663, %v665
        %v667 = vrot.slane %v650, %v666
        %vm668 = vcmask 130112
        %v669 = vsel %vm668, %v667, %v662
        %v670 = vadd.s32 %v658, 4294967280
        %v671 = vlaneseq
        %v672 = vshrl.u32 %v671, 7
        %v673 = vsub.s32 %v670, %v672
        %v674 = vrot.slane %v653, %v673
        %vm675 = vcmask 195712
        %v676 = vsel %vm675, %v674, %v669
        %v677 = vadd.s32 %v658, 4294967272
        %v678 = vlaneseq
        %v679 = vshrl.u32 %v678, 7
        %v680 = vsub.s32 %v677, %v679
        %v681 = vrot.slane %v656, %v680
        %vm682 = vcmask 261312
        %v683 = vsel %vm682, %v681, %v676
        %v685 = vunpack.c.l.s4 1966171168
        %v686 = vunpack.c.0.s8 %v685
        %v687 = vlaneseq
        %v688 = vshrl.u32 %v687, 7
        %v689 = vsub.s32 %v686, %v688
        %v690 = vrot.slane %v683, %v689
        %v692 = vunpack.c.l.s4 1966171168
        %v693 = vunpack.c.0.s8 %v692
        %v694 = vlaneseq
        %v695 = vshrl.u32 %v694, 7
        %v696 = vsub.s32 %v693, %v695
        %v697 = vrot.slane %v690, %v696
        %v699 = vadd.f32 %v304, %v697
        %vm700 = vcmask 253952
        %701 = vst.msk [vmem:[#allocation2] sm:$0x1] %vm700, %v699
        %p702 = scmp.eq.s32.totalorder %s26, 3
        // Predicated region
        $region53: #{tpu_custom_call.1} parent=43 // pred_check
          %p703 = pneg %p702
        $region54: #{tpu_custom_call.1} parent=43 // pred_check_branch
          %705 = sbr.rel (%p703) target = $region56
        $region55: #{tpu_custom_call.1} parent=43 // pred_region
          %v706 = vld [vmem:[#allocation2] sm:$0x1]
          %v707 = vmul.f32 %v706, 0.0009765625
          %v708 = vld [vmem:[%s1] sm:$0xff]
          %v709 = vld [vmem:[%s1 + $0x8] sm:$0xff]
          %v710 = vld [vmem:[%s1 + $0x10] sm:$0xff]
          %v711 = vld [vmem:[%s1 + $0x18] sm:$0xff]
          %v712 = vld [vmem:[%s2] sm:$0x1]
          %vm713 = vcmask 261120
          %v715 = vsel %vm713, %v707, 0
          %717 = vmatprep.subr.mxu0 0.0
          %718 = vmatpush1.msra.mxu0 0.0
          %719 = vmatprep.subr.mxu0 0.0
          %720 = vmatpush1.msra.mxu0 0.0
          %721 = vmatprep.subr.mxu0 0.0
          %722 = vmatpush1.msra.mxu0 0.0
          %723 = vmatprep.subr.mxu0 0.0
          %724 = vmatpush1.msra.mxu0 0.0
          %725 = vmatprep.subr.mxu0 0.0
          %726 = vmatpush1.msra.mxu0 0.0
          %727 = vmatprep.subr.mxu0 0.0
          %728 = vmatpush1.msra.mxu0 0.0
          %729 = vmatprep.subr.mxu0 0.0
          %730 = vmatpush1.msra.mxu0 0.0
          %731 = vmatprep.subr.mxu0 0.0
          %732 = vmatpush1.msra.mxu0 0.0
          %733 = vmatprep.subr.mxu0 0.0
          %734 = vmatpush1.msra.mxu0 0.0
          %735 = vmatprep.subr.mxu0 0.0
          %736 = vmatpush1.msra.mxu0 0.0
          %737 = vmatprep.subr.mxu0 0.0
          %738 = vmatpush1.msra.mxu0 0.0
          %739 = vmatprep.subr.mxu0 0.0
          %740 = vmatpush1.msra.mxu0 0.0
          %741 = vmatprep.subr.mxu0 0.0
          %742 = vmatpush1.msra.mxu0 %v711
          %743 = vmatprep.subr.mxu0 0.0
          %744 = vmatpush1.msra.mxu0 %v710
          %745 = vmatprep.subr.mxu0 0.0
          %746 = vmatpush1.msra.mxu0 %v709
          %747 = vmatprep.subr.mxu0 0.0
          %748 = vmatpush1.msra.mxu0 %v708
          %749 = vmatprep.subr.mxu0 0.0
          %750 = vmatpush2.msra.mxu0 0.0
          %751 = vmatprep.subr.mxu0 0.0
          %752 = vmatpush2.msra.mxu0 0.0
          %753 = vmatprep.subr.mxu0 0.0
          %754 = vmatpush2.msra.mxu0 0.0
          %755 = vmatprep.subr.mxu0 0.0
          %756 = vmatpush2.msra.mxu0 0.0
          %757 = vmatprep.subr.mxu0 0.0
          %758 = vmatpush2.msra.mxu0 0.0
          %759 = vmatprep.subr.mxu0 0.0
          %760 = vmatpush2.msra.mxu0 0.0
          %761 = vmatprep.subr.mxu0 0.0
          %762 = vmatpush2.msra.mxu0 0.0
          %763 = vmatprep.subr.mxu0 0.0
          %764 = vmatpush2.msra.mxu0 0.0
          %765 = vmatprep.subr.mxu0 0.0
          %766 = vmatpush2.msra.mxu0 0.0
          %767 = vmatprep.subr.mxu0 0.0
          %768 = vmatpush2.msra.mxu0 0.0
          %769 = vmatprep.subr.mxu0 0.0
          %770 = vmatpush2.msra.mxu0 0.0
          %771 = vmatprep.subr.mxu0 0.0
          %772 = vmatpush2.msra.mxu0 0.0
          %773 = vmatprep.subr.mxu0 0.0
          %774 = vmatpush2.msra.mxu0 0.0
          %775 = vmatprep.subr.mxu0 0.0
          %776 = vmatpush2.msra.mxu0 0.0
          %777 = vmatprep.subr.mxu0 0.0
          %778 = vmatpush2.msra.mxu0 0.0
          %779 = vmatprep.subr.mxu0 0.0
          %780 = vmatpush2.msra.mxu0 0.0
          %781 = vmatprep.mubr.f32.mxu0 0.0
          %782 = vmatmul.mubr.f32.gmra.mxu0 %v715
          %v783 = vpop.f32.mrf.mxu0
          %v784 = vadd.f32 %v712, %v783
          %v785 = vpop.f32.mrf.mxu0
          %786 = vdwg.mxu0
          %s787 = sld [smem:[#allocation3]]
          %vm788 = vcmp.ge.f32.partialorder %v784, 0.0
          %v789 = vstv %s787
          %v790 = vmul.f32 %v789, %v784
          %v791 = vsel %vm788, %v784, %v790
          %v792 = vld [vmem:[%s4] sm:$0x3]
          %v793 = vld [vmem:[%s5] sm:$0x1]
          %vm794 = vcmask 15360
          %v796 = vsel %vm794, %v791, 0
          %vm798 = vcmask 1041408
          %v800 = vsel %vm798, %v792, 0
          %802 = vmatprep.subr.mxu0 0.0
          %803 = vmatpush1.msra.mxu0 0.0
          %804 = vmatprep.subr.mxu0 0.0
          %805 = vmatpush1.msra.mxu0 0.0
          %806 = vmatprep.subr.mxu0 0.0
          %807 = vmatpush1.msra.mxu0 0.0
          %808 = vmatprep.subr.mxu0 0.0
          %809 = vmatpush1.msra.mxu0 0.0
          %810 = vmatprep.subr.mxu0 0.0
          %811 = vmatpush1.msra.mxu0 0.0
          %812 = vmatprep.subr.mxu0 0.0
          %813 = vmatpush1.msra.mxu0 0.0
          %814 = vmatprep.subr.mxu0 0.0
          %815 = vmatpush1.msra.mxu0 0.0
          %816 = vmatprep.subr.mxu0 0.0
          %817 = vmatpush1.msra.mxu0 0.0
          %818 = vmatprep.subr.mxu0 0.0
          %819 = vmatpush1.msra.mxu0 0.0
          %820 = vmatprep.subr.mxu0 0.0
          %821 = vmatpush1.msra.mxu0 0.0
          %822 = vmatprep.subr.mxu0 0.0
          %823 = vmatpush1.msra.mxu0 0.0
          %824 = vmatprep.subr.mxu0 0.0
          %825 = vmatpush1.msra.mxu0 0.0
          %826 = vmatprep.subr.mxu0 0.0
          %827 = vmatpush1.msra.mxu0 0.0
          %828 = vmatprep.subr.mxu0 0.0
          %829 = vmatpush1.msra.mxu0 0.0
          %830 = vmatprep.subr.mxu0 0.0
          %831 = vmatpush1.msra.mxu0 0.0
          %832 = vmatprep.subr.mxu0 0.0
          %833 = vmatpush1.msra.mxu0 %v800
          %834 = vmatprep.subr.mxu0 0.0
          %835 = vmatpush2.msra.mxu0 0.0
          %836 = vmatprep.subr.mxu0 0.0
          %837 = vmatpush2.msra.mxu0 0.0
          %838 = vmatprep.subr.mxu0 0.0
          %839 = vmatpush2.msra.mxu0 0.0
          %840 = vmatprep.subr.mxu0 0.0
          %841 = vmatpush2.msra.mxu0 0.0
          %842 = vmatprep.subr.mxu0 0.0
          %843 = vmatpush2.msra.mxu0 0.0
          %844 = vmatprep.subr.mxu0 0.0
          %845 = vmatpush2.msra.mxu0 0.0
          %846 = vmatprep.subr.mxu0 0.0
          %847 = vmatpush2.msra.mxu0 0.0
          %848 = vmatprep.subr.mxu0 0.0
          %849 = vmatpush2.msra.mxu0 0.0
          %850 = vmatprep.subr.mxu0 0.0
          %851 = vmatpush2.msra.mxu0 0.0
          %852 = vmatprep.subr.mxu0 0.0
          %853 = vmatpush2.msra.mxu0 0.0
          %854 = vmatprep.subr.mxu0 0.0
          %855 = vmatpush2.msra.mxu0 0.0
          %856 = vmatprep.subr.mxu0 0.0
          %857 = vmatpush2.msra.mxu0 0.0
          %858 = vmatprep.subr.mxu0 0.0
          %859 = vmatpush2.msra.mxu0 0.0
          %860 = vmatprep.subr.mxu0 0.0
          %861 = vmatpush2.msra.mxu0 0.0
          %862 = vmatprep.subr.mxu0 0.0
          %863 = vmatpush2.msra.mxu0 0.0
          %864 = vmatprep.subr.mxu0 0.0
          %865 = vmatpush2.msra.mxu0 0.0
          %866 = vmatprep.mubr.f32.mxu0 0.0
          %867 = vmatmul.mubr.f32.gmra.mxu0 %v796
          %v868 = vpop.f32.mrf.mxu0
          %v869 = vadd.f32 %v793, %v868
          %v870 = vpop.f32.mrf.mxu0
          %871 = vdwg.mxu0
          %v872 = vxor.u32 %v869, 2147483648
          %v873 = vmul.f32 %v872, 1.442695
          %v874 = vpow.pop %v873
          %v875 = vadd.f32 %v874, 1.0
          %v876 = vrcp.pop %v875
          %v877 = vmul.f32 1.0, %v876
          %v878 = vlaneseq
          %v879 = vshrl.u32 %v878, 7
          %v880 = vsub.s32 0, %v879
          %v881 = vrot.slane %v877, %v880
          %883 = vbcast.lane.b32.xlu0 %v881, 256
          %v884 = vpop.permute.xlu0 %883
          %s886 = sor.u32 256, 8
          %887 = vbcast.lane.b32.xlu0 %v881, %s886
          %v888 = vpop.permute.xlu0 %887
          %s890 = sor.u32 256, 16
          %891 = vbcast.lane.b32.xlu0 %v881, %s890
          %v892 = vpop.permute.xlu0 %891
          %s894 = sor.u32 256, 24
          %895 = vbcast.lane.b32.xlu0 %v881, %s894
          %v896 = vpop.permute.xlu0 %895
          %vm897 = vcmask 7168
          %898 = vst.msk [vmem:[%s289] sm:$0xff] %vm897, %v884
          %899 = vst.msk [vmem:[%s289 + $0x8] sm:$0xff] %vm897, %v888
          %900 = vst.msk [vmem:[%s289 + $0x10] sm:$0xff] %vm897, %v892
          %901 = vst.msk [vmem:[%s289 + $0x18] sm:$0xff] %vm897, %v896
        $region56: #{tpu_custom_call.1} parent=43 // pred_fallthru
          _
        %p902 = scmp.lt.s32.totalorder %s25, 1
        %s903 = scalar_select %p902, %s25, 1
        %s904 = smul.addr %s903, 4
        %s905 = smul.addr %s904, 8
        %s906 = scalar_lea.vmem %s6, %s905
        // Predicated region
        $region57: #{tpu_custom_call.1} parent=43 // pred_check
          %p907 = pneg %p184
        $region58: #{tpu_custom_call.1} parent=43 // pred_check_branch
          %909 = sbr.rel (%p907) target = $region60
        $region59: #{tpu_custom_call.1} parent=43 // pred_region
          _
        $region60: #{tpu_custom_call.1} parent=43 // pred_fallthru
          _
      $region44: #{tpu_custom_call.1} parent=5 // pred_fallthru
        _
      %p910 = scmp.le.s32.totalorder 2, %s16
      // Predicated region
      $region61: #{tpu_custom_call.1} parent=5 // pred_check
        %p911 = pneg %p910
      $region62: #{tpu_custom_call.1} parent=5 // pred_check_branch
        %913 = sbr.rel (%p911) target = $region64
      $region63: #{tpu_custom_call.1} parent=5 // pred_region
        %s914 = ssub.s32 %s16, 2
        // Predicated region
        $region65: #{tpu_custom_call.1} parent=63 // pred_check
          %p915 = pneg %p190
        $region66: #{tpu_custom_call.1} parent=63 // pred_check_branch
          %917 = sbr.rel (%p915) target = $region68
        $region67: #{tpu_custom_call.1} parent=63 // pred_region
          %p918 = scmp.lt.s32.totalorder %s27, 1
          %s919 = scalar_select %p918, %s27, 1
          %s920 = smul.addr %s919, 4
          %s921 = smul.addr %s920, 8
          %s922 = scalar_lea.vmem %s6, %s921
        $region68: #{tpu_custom_call.1} parent=63 // pred_fallthru
          _
      $region64: #{tpu_custom_call.1} parent=5 // pred_fallthru
        _
    $region6: #{tpu_custom_call.1} parent=1 // loop_footer
      %s20 = sadd.s32 1, %s16
    $region7: #{tpu_custom_call.1} parent=1 // loop_footer_branch
      %15 = sbr.rel target = $region3
    $region8: #{tpu_custom_call.1} parent=1 // loop_exit
      _
    %923 = vsyncpa [#allocation5], 1
    %s924 = scalar_lea.sflag [#allocation5], 1
    %925 = vsyncpa %s924, 1

</llo_original>
